<compile_context>
chip_gen: v7x
topology: tpu7x:2x2x1
jax: 0.10.0
libtpu: 0.0.40
codegen_flags: <defaults>
</compile_context>

<pallas_src>
import math
import jax
import jax.numpy as jnp
from jax.experimental import pallas as pl
from jax.experimental.pallas import tpu as pltpu

FLOOR_NUM = 16            # fixed by the .split([16,16,1,1,16,16,16]) in forward
CALL_HIDDEN = 32          # up/dn/car wait encoders
SMALL_HIDDEN = 8          # position / srv_dir encoders
EMB_DIM = 8               # door embedding dim
HIDDEN_TOTAL = 2 * SMALL_HIDDEN + 3 * CALL_HIDDEN              # 112
OUT_DIM = SMALL_HIDDEN + EMB_DIM + SMALL_HIDDEN + 3 * CALL_HIDDEN  # 120

PACK = 128                # lane-aligned packed width for inputs/hidden/output
IN_RAW = 82               # raw input feature width
DOOR_COL = 33             # door_state column in the raw input
DOOR_OH_OFF = HIDDEN_TOTAL  # door one-hot occupies hidden cols 112:116

# Output column layout of the packed (128-wide) output.
POS_OUT, DOOR_OUT, DIR_OUT, CAR_OUT, UP_OUT, DN_OUT = 0, 8, 16, 24, 56, 88


# ---------------------------------------------------------------------------
# Parameter initialization (deterministic, mimics torch orthogonal_ + zeros)
# ---------------------------------------------------------------------------
def _orthogonal(key, rows, cols, gain):
    a = jax.random.normal(key, (rows, cols), dtype=jnp.float32)
    if rows < cols:
        a = a.T
    q, r = jnp.linalg.qr(a)
    q = q * jnp.sign(jnp.diag(r))
    if rows < cols:
        q = q.T
    return gain * q


def make_params(key):
    gain = math.sqrt(2.0)
    params = {}
    names_and_hidden = [
        ("pos", SMALL_HIDDEN),
        ("dir", SMALL_HIDDEN),
        ("car", CALL_HIDDEN),
        ("up", CALL_HIDDEN),
        ("dn", CALL_HIDDEN),
    ]
    keys = jax.random.split(key, 2 * len(names_and_hidden) + 1)
    for i, (name, hid) in enumerate(names_and_hidden):
        # torch Linear weight is (out, in); kernel uses (in, out) => transpose.
        w1 = _orthogonal(keys[2 * i], hid, FLOOR_NUM, gain).T      # (16, hid)
        w2 = _orthogonal(keys[2 * i + 1], hid, hid, gain).T        # (hid, hid)
        b1 = jnp.zeros((1, hid), jnp.float32)
        b2 = jnp.zeros((1, hid), jnp.float32)
        params[name] = (w1, b1, w2, b2)
    # nn.Embedding default init: N(0, 1)
    params["emb"] = jax.random.normal(keys[-1], (4, EMB_DIM), dtype=jnp.float32)
    return params


# ---------------------------------------------------------------------------
# Wrapper-side packing of the 21 small parameters into 4 lane-aligned arrays
# ---------------------------------------------------------------------------
def pack_params(params):
    w1 = jnp.zeros((PACK, PACK), jnp.float32)
    b1 = jnp.zeros((1, PACK), jnp.float32)
    w2 = jnp.zeros((PACK, PACK), jnp.float32)
    b2 = jnp.zeros((1, PACK), jnp.float32)

    # name -> (input row offset, hidden col offset, output col offset, hidden)
    layout = {
        "pos": (0, 0, POS_OUT, SMALL_HIDDEN),
        "dir": (16, 8, DIR_OUT, SMALL_HIDDEN),
        "car": (34, 16, CAR_OUT, CALL_HIDDEN),
        "up": (50, 48, UP_OUT, CALL_HIDDEN),
        "dn": (66, 80, DN_OUT, CALL_HIDDEN),
    }
    for name, (in_off, h_off, o_off, hid) in layout.items():
        pw1, pb1, pw2, pb2 = params[name]
        w1 = w1.at[in_off:in_off + FLOOR_NUM, h_off:h_off + hid].set(pw1)
        b1 = b1.at[:, h_off:h_off + hid].set(pb1)
        w2 = w2.at[h_off:h_off + hid, o_off:o_off + hid].set(pw2)
        b2 = b2.at[:, o_off:o_off + hid].set(pb2)

    # Door embedding: one-hot hidden rows 112:116 -> output cols 8:16.
    w2 = w2.at[DOOR_OH_OFF:DOOR_OH_OFF + 4, DOOR_OUT:DOOR_OUT + EMB_DIM].set(
        params["emb"])
    return w1, b1, w2, b2


# ---------------------------------------------------------------------------
# Pallas kernel: two fused 128x128 matmuls + masked ReLU, dense 128-lane store
# ---------------------------------------------------------------------------
def _elev_encoder_kernel(x_ref, w1_ref, b1_ref, w2_ref, b2_ref, out_ref):
    x = x_ref[...]                                   # (TB, 128) f32
    tb = x_ref.shape[0]

    # Layer 1: all five first-layer Linears in one MXU push.
    h = jnp.dot(x, w1_ref[...], preferred_element_type=jnp.float32) + b1_ref[...]
    h = jnp.maximum(h, 0.0)

    # Door one-hot written directly into hidden lanes 112:116 (those lanes are
    # exactly zero after the ReLU because W1/b1 are zero there) — no concat,
    # no sub-128 lane slicing of the hidden vector.
    lane = jax.lax.broadcasted_iota(jnp.int32, (tb, PACK), 1)
    door = x[:, DOOR_COL:DOOR_COL + 1].astype(jnp.int32)        # (TB, 1)
    one_hot = (lane == door + DOOR_OH_OFF).astype(jnp.float32)  # (TB, 128)
    h = h + one_hot

    # Layer 2 + embedding + concatenation fused: output columns are already in
    # the final [pos|door|dir|car|up|dn|pad] order.
    z = jnp.dot(h, w2_ref[...], preferred_element_type=jnp.float32) + b2_ref[...]

    # ReLU everywhere except the door-embedding columns (8:16), which the
    # reference passes through un-activated.
    door_cols = (lane >= DOOR_OUT) & (lane < DOOR_OUT + EMB_DIM)
    out_ref[...] = jnp.where(door_cols, z, jnp.maximum(z, 0.0))


# ---------------------------------------------------------------------------
# Wrapper
# ---------------------------------------------------------------------------
def _round_up(n, m):
    return ((n + m - 1) // m) * m


def elev_encoder1_forward(x, packed_params, *, tile_b=256):
    w1, b1, w2, b2 = packed_params
    B = x.shape[0]

    # Batch tile: multiple of 8 sublanes, capped so VMEM per step stays small.
    TB = min(_round_up(tile_b, 8), _round_up(max(B, 1), 8))
    B_pad = _round_up(B, TB)

    # Lane-pad 82 -> 128 and sublane-pad the batch (wrapper-side glue; padded
    # columns hit all-zero W1 rows, padded rows are sliced off afterwards).
    xp = jnp.zeros((B_pad, PACK), jnp.float32)
    xp = xp.at[:B, :IN_RAW].set(x.astype(jnp.float32))

    grid = (B_pad // TB,)

    cost = pl.CostEstimate(
        flops=2 * 2 * B_pad * PACK * PACK,                       # two matmuls
        transcendentals=0,
        bytes_accessed=B_pad * PACK * 4 * 2 + 2 * (PACK * PACK + PACK) * 4,
    )

    out = pl.pallas_call(
        _elev_encoder_kernel,
        out_shape=jax.ShapeDtypeStruct((B_pad, PACK), jnp.float32),
        grid=grid,
        in_specs=[
            pl.BlockSpec((TB, PACK), lambda i: (i, 0)),     # x tile
            pl.BlockSpec((PACK, PACK), lambda i: (0, 0)),   # W1 (resident)
            pl.BlockSpec((1, PACK), lambda i: (0, 0)),      # b1 (resident)
            pl.BlockSpec((PACK, PACK), lambda i: (0, 0)),   # W2 (resident)
            pl.BlockSpec((1, PACK), lambda i: (0, 0)),      # b2 (resident)
        ],
        out_specs=pl.BlockSpec((TB, PACK), lambda i: (i, 0)),
        compiler_params=pltpu.CompilerParams(
            dimension_semantics=("parallel",)),
        cost_estimate=cost,
    )(xp, w1, b1, w2, b2)

    return out[:B, :OUT_DIM]


# ---------------------------------------------------------------------------
# Pure-JAX reference (for a quick sanity check)
# ---------------------------------------------------------------------------
def _reference_forward(x, params):
    def mlp(v, p):
        w1, b1, w2, b2 = p
        h = jnp.maximum(v @ w1 + b1, 0.0)
        return jnp.maximum(h @ w2 + b2, 0.0)

    pos_vec, dir_vec = x[:, 0:16], x[:, 16:32]
    door = x[:, 33:34].astype(jnp.int32)
    car_call, up_call, dn_call = x[:, 34:50], x[:, 50:66], x[:, 66:82]
    enc_pos = mlp(pos_vec, params["pos"])
    enc_dir = mlp(dir_vec, params["dir"])
    enc_car = mlp(car_call, params["car"])
    enc_up = mlp(up_call, params["up"])
    enc_dn = mlp(dn_call, params["dn"])
    enc_door = params["emb"][door[:, 0]]
    return jnp.concatenate(
        (enc_pos, enc_door, enc_dir, enc_car, enc_up, enc_dn), axis=-1
    )


if __name__ == "__main__":
    key = jax.random.PRNGKey(0)
    k_param, k_pos, k_dir, k_vol, k_door, k_call = jax.random.split(key, 6)

    params = make_params(k_param)
    packed = pack_params(params)

    B = 20  # small, non-multiple-of-8 batch to exercise padding + tiling
    pos_vec = jax.random.uniform(k_pos, (B, FLOOR_NUM), dtype=jnp.float32)
    dir_vec = jax.random.uniform(k_dir, (B, FLOOR_NUM), minval=-1.0, maxval=1.0)
    vol = jax.random.uniform(k_vol, (B, 1), dtype=jnp.float32)
    door_state = jax.random.randint(k_door, (B, 1), 0, 4).astype(jnp.float32)
    calls = (jax.random.uniform(k_call, (B, 3 * FLOOR_NUM)) > 0.5).astype(jnp.float32)
    x = jnp.concatenate([pos_vec, dir_vec, vol, door_state, calls], axis=-1)
    assert x.shape == (B, IN_RAW)

    # tile_b=8 so the tiny test batch still runs a multi-step (pipelined) grid.
    out = elev_encoder1_forward(x, packed, tile_b=8)
    out = jax.block_until_ready(out)

    ref = _reference_forward(x, params)
    assert out.shape == (B, OUT_DIM)
    assert jnp.allclose(out, ref, atol=1e-4, rtol=1e-4), "mismatch vs reference"

    print("KERNEL_OK")
</pallas_src>

<mosaic_0001>
module attributes {stable_mosaic.version = 11 : i64} {
  func.func @_elev_encoder_kernel(%arg0: i32, %arg1: memref<8x128xf32, #tpu.memory_space<vmem>>, %arg2: memref<128x128xf32, #tpu.memory_space<vmem>>, %arg3: memref<1x128xf32, #tpu.memory_space<vmem>>, %arg4: memref<128x128xf32, #tpu.memory_space<vmem>>, %arg5: memref<1x128xf32, #tpu.memory_space<vmem>>, %arg6: memref<8x128xf32, #tpu.memory_space<vmem>>) attributes {dimension_semantics = [#tpu.dimension_semantics<parallel>], iteration_bounds = array<i64: 3>, scalar_prefetch = 0 : i64, scratch_operands = 0 : i64, tpu.core_type = #tpu.core_type<tc>, window_params = [{transform_indices = @transform_0, window_bounds = array<i64: 8, 128>}, {pipeline_mode = #tpu.pipeline_mode<synchronous>, transform_indices = @transform_1, window_bounds = array<i64: 128, 128>}, {pipeline_mode = #tpu.pipeline_mode<synchronous>, transform_indices = @transform_2, window_bounds = array<i64: 1, 128>}, {pipeline_mode = #tpu.pipeline_mode<synchronous>, transform_indices = @transform_3, window_bounds = array<i64: 128, 128>}, {pipeline_mode = #tpu.pipeline_mode<synchronous>, transform_indices = @transform_4, window_bounds = array<i64: 1, 128>}, {transform_indices = @transform_5, window_bounds = array<i64: 8, 128>}]} {
    %c0 = arith.constant 0 : index
    %c0_0 = arith.constant 0 : index
    %0 = vector.load %arg1[%c0, %c0_0] : memref<8x128xf32, #tpu.memory_space<vmem>>, vector<8x128xf32>
    %c0_1 = arith.constant 0 : index
    %c0_2 = arith.constant 0 : index
    %1 = vector.load %arg2[%c0_1, %c0_2] : memref<128x128xf32, #tpu.memory_space<vmem>>, vector<128x128xf32>
    %cst = arith.constant dense<0.000000e+00> : vector<8x128xf32>
    %2 = tpu.matmul %0, %1, %cst {dimension_numbers = #tpu.dot_dimension_numbers<[1], [0], [0], [1], [0, 0, 1, 1], [], []>} : vector<8x128xf32>, vector<128x128xf32>, vector<8x128xf32> -> vector<8x128xf32>
    %c0_3 = arith.constant 0 : index
    %c0_4 = arith.constant 0 : index
    %3 = vector.load %arg3[%c0_3, %c0_4] : memref<1x128xf32, #tpu.memory_space<vmem>>, vector<1x128xf32>
    %4 = vector.broadcast %3 : vector<1x128xf32> to vector<8x128xf32>
    %5 = arith.addf %2, %4 : vector<8x128xf32>
    %cst_5 = arith.constant 0.000000e+00 : f32
    %6 = vector.broadcast %cst_5 : f32 to vector<8x128xf32>
    %7 = arith.maximumf %5, %6 : vector<8x128xf32>
    %8 = tpu.iota {dimensions = array<i32: 1>} : vector<8x128xi32>
    %9 = vector.extract_strided_slice %0 {offsets = [0, 33], sizes = [8, 1], strides = [1, 1]} : vector<8x128xf32> to vector<8x1xf32>
    %10 = arith.fptosi %9 : vector<8x1xf32> to vector<8x1xi32>
    %c112_i32 = arith.constant 112 : i32
    %11 = vector.broadcast %c112_i32 : i32 to vector<8x1xi32>
    %12 = arith.addi %10, %11 : vector<8x1xi32>
    %13 = vector.broadcast %12 : vector<8x1xi32> to vector<8x128xi32>
    %14 = arith.cmpi eq, %8, %13 : vector<8x128xi32>
    %15 = arith.extui %14 : vector<8x128xi1> to vector<8x128xi32>
    %16 = arith.sitofp %15 : vector<8x128xi32> to vector<8x128xf32>
    %17 = arith.addf %7, %16 : vector<8x128xf32>
    %c0_6 = arith.constant 0 : index
    %c0_7 = arith.constant 0 : index
    %18 = vector.load %arg4[%c0_6, %c0_7] : memref<128x128xf32, #tpu.memory_space<vmem>>, vector<128x128xf32>
    %cst_8 = arith.constant dense<0.000000e+00> : vector<8x128xf32>
    %19 = tpu.matmul %17, %18, %cst_8 {dimension_numbers = #tpu.dot_dimension_numbers<[1], [0], [0], [1], [0, 0, 1, 1], [], []>} : vector<8x128xf32>, vector<128x128xf32>, vector<8x128xf32> -> vector<8x128xf32>
    %c0_9 = arith.constant 0 : index
    %c0_10 = arith.constant 0 : index
    %20 = vector.load %arg5[%c0_9, %c0_10] : memref<1x128xf32, #tpu.memory_space<vmem>>, vector<1x128xf32>
    %21 = vector.broadcast %20 : vector<1x128xf32> to vector<8x128xf32>
    %22 = arith.addf %19, %21 : vector<8x128xf32>
    %c8_i32 = arith.constant 8 : i32
    %23 = vector.broadcast %c8_i32 : i32 to vector<8x128xi32>
    %24 = arith.cmpi sge, %8, %23 : vector<8x128xi32>
    %c16_i32 = arith.constant 16 : i32
    %25 = vector.broadcast %c16_i32 : i32 to vector<8x128xi32>
    %26 = arith.cmpi slt, %8, %25 : vector<8x128xi32>
    %27 = arith.andi %24, %26 : vector<8x128xi1>
    %cst_11 = arith.constant 0.000000e+00 : f32
    %28 = vector.broadcast %cst_11 : f32 to vector<8x128xf32>
    %29 = arith.maximumf %22, %28 : vector<8x128xf32>
    %30 = arith.select %27, %22, %29 : vector<8x128xi1>, vector<8x128xf32>
    %c0_12 = arith.constant 0 : index
    %c0_13 = arith.constant 0 : index
    %31 = vector.load %arg6[%c0_12, %c0_13] : memref<8x128xf32, #tpu.memory_space<vmem>>, vector<8x128xf32>
    tpu.vector_store %arg6[%c0_12, %c0_13], %30 {strides = array<i32>} : memref<8x128xf32, #tpu.memory_space<vmem>>, vector<8x128xf32>,
    return
  }
  func.func @transform_0(%arg0: i32) -> (i32, i32) {
    %c0_i32 = arith.constant 0 : i32
    %c0_i32_0 = arith.constant 0 : i32
    return %arg0, %c0_i32 : i32, i32
  }
  func.func @transform_1(%arg0: i32) -> (i32, i32) {
    %c0_i32 = arith.constant 0 : i32
    %c0_i32_0 = arith.constant 0 : i32
    %c0_i32_1 = arith.constant 0 : i32
    return %c0_i32, %c0_i32_0 : i32, i32
  }
  func.func @transform_2(%arg0: i32) -> (i32, i32) {
    %c0_i32 = arith.constant 0 : i32
    %c0_i32_0 = arith.constant 0 : i32
    %c0_i32_1 = arith.constant 0 : i32
    return %c0_i32, %c0_i32_0 : i32, i32
  }
  func.func @transform_3(%arg0: i32) -> (i32, i32) {
    %c0_i32 = arith.constant 0 : i32
    %c0_i32_0 = arith.constant 0 : i32
    %c0_i32_1 = arith.constant 0 : i32
    return %c0_i32, %c0_i32_0 : i32, i32
  }
  func.func @transform_4(%arg0: i32) -> (i32, i32) {
    %c0_i32 = arith.constant 0 : i32
    %c0_i32_0 = arith.constant 0 : i32
    %c0_i32_1 = arith.constant 0 : i32
    return %c0_i32, %c0_i32_0 : i32, i32
  }
  func.func @transform_5(%arg0: i32) -> (i32, i32) {
    %c0_i32 = arith.constant 0 : i32
    %c0_i32_0 = arith.constant 0 : i32
    return %arg0, %c0_i32 : i32, i32
  }
}

</mosaic_0001>

<llo_original>
// kernel: tpu_custom_call.1
$region0: #{tpu_custom_call.1}
  #allocation0 [shape = 'u32[]', space=smem, size = 0x4, offset = 0x4, fixed_abs, tag = 'smem constant byte address 0x4 - core index']
  #allocation1 [shape = 'u32[144,128]{1,0:T(1,128)}', space=vmem, size = 0x12000, scoped, tag = 'internal scratch']
  %s0 = inlined_call_operand.hbm [shape: f32[24,128], index: 0, kind: input, shape index: {}]
  %s1 = inlined_call_operand.hbm [shape: f32[128,128], index: 1, kind: input, shape index: {}]
  %s2 = inlined_call_operand.vmem [shape: f32[1,128], index: 2, kind: input, shape index: {}]
  %s3 = inlined_call_operand.hbm [shape: f32[128,128], index: 3, kind: input, shape index: {}]
  %s4 = inlined_call_operand.vmem [shape: f32[1,128], index: 4, kind: input, shape index: {}]
  %s5 = inlined_call_operand.hbm [shape: f32[24,128], index: 5, kind: output, shape index: {}]
  %s6 = sld [smem:[#allocation0]]
  $region65: #{tpu_custom_call.1} parent=0
    _
  %s8 = ssub.s32 1, %s6
  %s9 = scalar_select 0, %s8, %s6
  $region1: #{tpu_custom_call.1} parent=0
    #allocation2 [shape = 'u8[8192]{0}', space=vmem, size = 0x2000, scoped, tag = 'input window, operand 0']
    #allocation3 [shape = 's32[2]{0}', space=sflag, size = 0x8, scoped, tag = 'scoped memory for tpu_custom_call.1']
    #allocation4 [shape = 's32[2]{0}', space=sflag, size = 0x8, scoped, tag = 'scoped memory for tpu_custom_call.1']
    #allocation5 [shape = 'u8[65536]{0}', space=vmem, size = 0x10000, scoped, tag = 'input window, operand 1, single buffered']
    #allocation6 [shape = 's32[1]{0}', space=sflag, size = 0x4, scoped, tag = 'scoped memory for tpu_custom_call.1']
    #allocation7 [shape = 'u8[65536]{0}', space=vmem, size = 0x10000, scoped, tag = 'input window, operand 3, single buffered']
    #allocation8 [shape = 'u8[8192]{0}', space=vmem, size = 0x2000, scoped, tag = 'output window, operand 0']
    %10 = vsyncpa [#allocation3], 0
    %s11 = scalar_lea.sflag [#allocation3], 1
    %12 = vsyncpa %s11, 0
    %13 = vsyncpa [#allocation6], 0
    %14 = vsyncpa [#allocation4], 0
    %s15 = scalar_lea.sflag [#allocation4], 1
    %16 = vsyncpa %s15, 0
    loop: start=0, step=1, limit=5
    $region2: #{tpu_custom_call.1} parent=1 // loop_pre_header
      _
    $region3: #{tpu_custom_call.1} parent=1 // loop_header
      %s18 = sphi 0, %s22
      %p19 = scmp.ge.s32.totalorder %s18, 5
      %s28 = sphi 0, %s30
      %s31 = sphi 0, %s28
      %s32 = sphi 0, %s31
      %s48 = sphi 0, %s32
      %s52 = sphi 0, %s52
      %s54 = sphi 0, %s52
      %s55 = sphi 0, %s54
      %s69 = sphi 0, %s55
      %s73 = sphi 0, %s73
      %s75 = sphi 0, %s73
      %s76 = sphi 0, %s75
      %s90 = sphi 0, %s76
      %s94 = sphi 0, %s94
      %s96 = sphi 0, %s94
      %s97 = sphi 0, %s96
      %s111 = sphi 0, %s97
      %s115 = sphi 0, %s115
      %s117 = sphi 0, %s115
      %s118 = sphi 0, %s117
      %s132 = sphi 0, %s118
      %s138 = sphi 0, %s140
      %s141 = sphi 0, %s138
      %s142 = sphi 0, %s141
      %s158 = sphi 0, %s142
    $region4: #{tpu_custom_call.1} parent=1 // loop_header_branch
      %21 = sbr.rel (%p19) target = $region8
    $region5: #{tpu_custom_call.1} parent=1 // loop_body
      %s23 = ssub.s32 %s18, 1
      %s24 = ssub.s32 %s18, 2
      %s25 = sadd.s32 %s18, 1
      %s26 = ssub.s32 %s18, %s25
      %p27 = scmp.eq.s32.totalorder %s26, 0
      %s29 = sadd.s32 %s28, 1
      %s30 = scalar_select %p27, %s28, %s29
      %p33 = pneg %p27
      %p34 = scmp.eq.s32.totalorder %s18, 2
      %p35 = por %p33, %p34
      %p36 = scmp.ne.s32.totalorder %s28, %s31
      %p37 = scmp.eq.s32.totalorder %s18, 0
      %p38 = por %p36, %p37
      %p39 = scmp.ne.s32.totalorder %s28, %s31
      %p40 = scmp.eq.s32.totalorder %s23, 2
      %p41 = por %p39, %p40
      %p42 = scmp.ne.s32.totalorder %s31, %s32
      %p43 = scmp.eq.s32.totalorder %s23, 0
      %p44 = por %p42, %p43
      %p45 = scmp.ne.s32.totalorder %s31, %s32
      %p46 = scmp.eq.s32.totalorder %s24, 2
      %p47 = por %p45, %p46
      %p49 = scmp.ne.s32.totalorder %s32, %s48
      %p50 = scmp.eq.s32.totalorder %s24, 0
      %p51 = por %p49, %p50
      %s53 = sadd.s32 %s52, 1
      %p56 = scmp.eq.s32.totalorder %s18, 2
      %p57 = scmp.ne.s32.totalorder %s52, %s54
      %p58 = scmp.eq.s32.totalorder %s18, 0
      %p59 = por %p57, %p58
      %p60 = scmp.ne.s32.totalorder %s52, %s54
      %p61 = scmp.eq.s32.totalorder %s23, 2
      %p62 = por %p60, %p61
      %p63 = scmp.ne.s32.totalorder %s54, %s55
      %p64 = scmp.eq.s32.totalorder %s23, 0
      %p65 = por %p63, %p64
      %p66 = scmp.ne.s32.totalorder %s54, %s55
      %p67 = scmp.eq.s32.totalorder %s24, 2
      %p68 = por %p66, %p67
      %p70 = scmp.ne.s32.totalorder %s55, %s69
      %p71 = scmp.eq.s32.totalorder %s24, 0
      %p72 = por %p70, %p71
      %s74 = sadd.s32 %s73, 1
      %p77 = scmp.eq.s32.totalorder %s18, 2
      %p78 = scmp.ne.s32.totalorder %s73, %s75
      %p79 = scmp.eq.s32.totalorder %s18, 0
      %p80 = por %p78, %p79
      %p81 = scmp.ne.s32.totalorder %s73, %s75
      %p82 = scmp.eq.s32.totalorder %s23, 2
      %p83 = por %p81, %p82
      %p84 = scmp.ne.s32.totalorder %s75, %s76
      %p85 = scmp.eq.s32.totalorder %s23, 0
      %p86 = por %p84, %p85
      %p87 = scmp.ne.s32.totalorder %s75, %s76
      %p88 = scmp.eq.s32.totalorder %s24, 2
      %p89 = por %p87, %p88
      %p91 = scmp.ne.s32.totalorder %s76, %s90
      %p92 = scmp.eq.s32.totalorder %s24, 0
      %p93 = por %p91, %p92
      %s95 = sadd.s32 %s94, 1
      %p98 = scmp.eq.s32.totalorder %s18, 2
      %p99 = scmp.ne.s32.totalorder %s94, %s96
      %p100 = scmp.eq.s32.totalorder %s18, 0
      %p101 = por %p99, %p100
      %p102 = scmp.ne.s32.totalorder %s94, %s96
      %p103 = scmp.eq.s32.totalorder %s23, 2
      %p104 = por %p102, %p103
      %p105 = scmp.ne.s32.totalorder %s96, %s97
      %p106 = scmp.eq.s32.totalorder %s23, 0
      %p107 = por %p105, %p106
      %p108 = scmp.ne.s32.totalorder %s96, %s97
      %p109 = scmp.eq.s32.totalorder %s24, 2
      %p110 = por %p108, %p109
      %p112 = scmp.ne.s32.totalorder %s97, %s111
      %p113 = scmp.eq.s32.totalorder %s24, 0
      %p114 = por %p112, %p113
      %s116 = sadd.s32 %s115, 1
      %p119 = scmp.eq.s32.totalorder %s18, 2
      %p120 = scmp.ne.s32.totalorder %s115, %s117
      %p121 = scmp.eq.s32.totalorder %s18, 0
      %p122 = por %p120, %p121
      %p123 = scmp.ne.s32.totalorder %s115, %s117
      %p124 = scmp.eq.s32.totalorder %s23, 2
      %p125 = por %p123, %p124
      %p126 = scmp.ne.s32.totalorder %s117, %s118
      %p127 = scmp.eq.s32.totalorder %s23, 0
      %p128 = por %p126, %p127
      %p129 = scmp.ne.s32.totalorder %s117, %s118
      %p130 = scmp.eq.s32.totalorder %s24, 2
      %p131 = por %p129, %p130
      %p133 = scmp.ne.s32.totalorder %s118, %s132
      %p134 = scmp.eq.s32.totalorder %s24, 0
      %p135 = por %p133, %p134
      %s136 = ssub.s32 %s18, %s25
      %p137 = scmp.eq.s32.totalorder %s136, 0
      %s139 = sadd.s32 %s138, 1
      %s140 = scalar_select %p137, %s138, %s139
      %p143 = pneg %p137
      %p144 = scmp.eq.s32.totalorder %s18, 2
      %p145 = por %p143, %p144
      %p146 = scmp.ne.s32.totalorder %s138, %s141
      %p147 = scmp.eq.s32.totalorder %s18, 0
      %p148 = por %p146, %p147
      %p149 = scmp.ne.s32.totalorder %s138, %s141
      %p150 = scmp.eq.s32.totalorder %s23, 2
      %p151 = por %p149, %p150
      %p152 = scmp.ne.s32.totalorder %s141, %s142
      %p153 = scmp.eq.s32.totalorder %s23, 0
      %p154 = por %p152, %p153
      %p155 = scmp.ne.s32.totalorder %s141, %s142
      %p156 = scmp.eq.s32.totalorder %s24, 2
      %p157 = por %p155, %p156
      %p159 = scmp.ne.s32.totalorder %s142, %s158
      %p160 = scmp.eq.s32.totalorder %s24, 0
      %p161 = por %p159, %p160
      %p162 = scmp.le.s32.totalorder 1, %s18
      %p163 = scmp.lt.s32.totalorder %s18, 4
      %p164 = pnand %p162, %p163
      %p165 = pneg %p164
      // Predicated region
      $region9: #{tpu_custom_call.1} parent=5 // pred_check
        _
      $region10: #{tpu_custom_call.1} parent=5 // pred_check_branch
        %167 = sbr.rel (%p164) target = $region12
      $region11: #{tpu_custom_call.1} parent=5 // pred_region
        %s168 = ssub.s32 %s18, 1
        // Predicated region
        $region13: #{tpu_custom_call.1} parent=11 // pred_check
          %p169 = pneg %p65
        $region14: #{tpu_custom_call.1} parent=11 // pred_check_branch
          %171 = sbr.rel (%p169) target = $region16
        $region15: #{tpu_custom_call.1} parent=11 // pred_region
          %s173 = ssub.s32 2048, 2048
          %174 = vsyncadd [#allocation6], %s173
          %s175 = sshll.u32 [#allocation5], 4
          %s176 = int_to_ptr.vmem [resolvable:$true] %s175
          %181 = dma.hbm_to_vmem [thread:$0]  %s1, 2048, %s176, [#allocation6], 128, 128, 8
        $region16: #{tpu_custom_call.1} parent=11 // pred_fallthru
          _
        // Predicated region
        $region17: #{tpu_custom_call.1} parent=11 // pred_check
          %p182 = pneg %p86
        $region18: #{tpu_custom_call.1} parent=11 // pred_check_branch
          %184 = sbr.rel (%p182) target = $region20
        $region19: #{tpu_custom_call.1} parent=11 // pred_region
          _
        $region20: #{tpu_custom_call.1} parent=11 // pred_fallthru
          _
        // Predicated region
        $region21: #{tpu_custom_call.1} parent=11 // pred_check
          %p185 = pneg %p107
        $region22: #{tpu_custom_call.1} parent=11 // pred_check_branch
          %187 = sbr.rel (%p185) target = $region24
        $region23: #{tpu_custom_call.1} parent=11 // pred_region
          %s189 = ssub.s32 2048, 2048
          %190 = vsyncadd [#allocation6], %s189
          %s191 = sshll.u32 [#allocation7], 4
          %s192 = int_to_ptr.vmem [resolvable:$true] %s191
          %197 = dma.hbm_to_vmem [thread:$0]  %s3, 2048, %s192, [#allocation6], 128, 128, 8
        $region24: #{tpu_custom_call.1} parent=11 // pred_fallthru
          _
        // Predicated region
        $region25: #{tpu_custom_call.1} parent=11 // pred_check
          %p198 = pneg %p128
        $region26: #{tpu_custom_call.1} parent=11 // pred_check_branch
          %200 = sbr.rel (%p198) target = $region28
        $region27: #{tpu_custom_call.1} parent=11 // pred_region
          _
        $region28: #{tpu_custom_call.1} parent=11 // pred_fallthru
          _
      $region12: #{tpu_custom_call.1} parent=5 // pred_fallthru
        _
      %p201 = scmp.lt.s32.totalorder %s18, 3
      // Predicated region
      $region29: #{tpu_custom_call.1} parent=5 // pred_check
        %p202 = pneg %p201
      $region30: #{tpu_custom_call.1} parent=5 // pred_check_branch
        %204 = sbr.rel (%p202) target = $region32
      $region31: #{tpu_custom_call.1} parent=5 // pred_region
        // Predicated region
        $region33: #{tpu_custom_call.1} parent=31 // pred_check
          %p205 = pneg %p38
        $region34: #{tpu_custom_call.1} parent=31 // pred_check_branch
          %207 = sbr.rel (%p205) target = $region36
        $region35: #{tpu_custom_call.1} parent=31 // pred_region
          %s208 = sand.u32 %s28, 1
          %s209 = scalar_lea.sflag [#allocation3], %s208
          %s210 = sand.u32 %s28, 1
          %s211 = smul.addr %s210, 8
          %s212 = scalar_lea.vmem [#allocation2], %s211
          %s214 = ssub.s32 128, 128
          %215 = vsyncadd %s209, %s214
          %s216 = smul.addr %s18, 128
          %s217 = scalar_lea.hbm %s0, %s216
          %s219 = sshll.u32 %s212, 4
          %s220 = int_to_ptr.vmem [resolvable:$true] %s219
          %222 = dma.hbm_to_vmem [thread:$0]  %s217, 128, %s220, %s209
        $region36: #{tpu_custom_call.1} parent=31 // pred_fallthru
          _
      $region32: #{tpu_custom_call.1} parent=5 // pred_fallthru
        _
      %p223 = scmp.le.s32.totalorder 1, %s18
      %p224 = scmp.lt.s32.totalorder %s18, 4
      %p225 = pnand %p223, %p224
      %p226 = pneg %p225
      // Predicated region
      $region37: #{tpu_custom_call.1} parent=5 // pred_check
        _
      $region38: #{tpu_custom_call.1} parent=5 // pred_check_branch
        %228 = sbr.rel (%p225) target = $region40
      $region39: #{tpu_custom_call.1} parent=5 // pred_region
        %s229 = ssub.s32 %s18, 1
        %s230 = sand.u32 %s31, 1
        %s231 = scalar_lea.sflag [#allocation3], %s230
        %s232 = sand.u32 %s31, 1
        %s233 = smul.addr %s232, 8
        %s234 = scalar_lea.vmem [#allocation2], %s233
        // Predicated region
        $region41: #{tpu_custom_call.1} parent=39 // pred_check
          %p235 = pneg %p44
        $region42: #{tpu_custom_call.1} parent=39 // pred_check_branch
          %237 = sbr.rel (%p235) target = $region44
        $region43: #{tpu_custom_call.1} parent=39 // pred_region
          %238 = dma.done %s231, 128
        $region44: #{tpu_custom_call.1} parent=39 // pred_fallthru
          _
        // Predicated region
        $region45: #{tpu_custom_call.1} parent=39 // pred_check
          %p239 = pneg %p65
        $region46: #{tpu_custom_call.1} parent=39 // pred_check_branch
          %241 = sbr.rel (%p239) target = $region48
        $region47: #{tpu_custom_call.1} parent=39 // pred_region
          %242 = dma.done [#allocation6], 2048
        $region48: #{tpu_custom_call.1} parent=39 // pred_fallthru
          _
        // Predicated region
        $region49: #{tpu_custom_call.1} parent=39 // pred_check
          %p243 = pneg %p107
        $region50: #{tpu_custom_call.1} parent=39 // pred_check_branch
          %245 = sbr.rel (%p243) target = $region52
        $region51: #{tpu_custom_call.1} parent=39 // pred_region
          %246 = dma.done [#allocation6], 2048
        $region52: #{tpu_custom_call.1} parent=39 // pred_fallthru
          _
        %s247 = sand.u32 %s31, 1
        %s248 = scalar_lea.sflag [#allocation3], %s247
        %s249 = sand.u32 %s31, 1
        %s250 = smul.addr %s249, 8
        %s251 = scalar_lea.vmem [#allocation2], %s250
        %p252 = pneg %p44
        %p253 = pneg %p41
        %p254 = pneg %p65
        %p255 = pneg %p62
        %p256 = pneg %p86
        %p257 = pneg %p83
        %p258 = pneg %p107
        %p259 = pneg %p104
        %p260 = pneg %p128
        %p261 = pneg %p125
        %p262 = pneg %p154
        %p263 = pneg %p151
        %s264 = sand.u32 %s141, 1
        %s265 = scalar_lea.sflag [#allocation4], %s264
        %s266 = sand.u32 %s141, 1
        %s267 = smul.addr %s266, 8
        %s268 = scalar_lea.vmem [#allocation8], %s267
        %v269 = vld [vmem:[%s234] sm:$0xff]
        %v270 = vld [vmem:[#allocation5] sm:$0xff]
        %v271 = vld [vmem:[#allocation5 + $0x8] sm:$0xff]
        %v272 = vld [vmem:[#allocation5 + $0x10] sm:$0xff]
        %v273 = vld [vmem:[#allocation5 + $0x18] sm:$0xff]
        %v274 = vld [vmem:[#allocation5 + $0x20] sm:$0xff]
        %v275 = vld [vmem:[#allocation5 + $0x28] sm:$0xff]
        %v276 = vld [vmem:[#allocation5 + $0x30] sm:$0xff]
        %v277 = vld [vmem:[#allocation5 + $0x38] sm:$0xff]
        %v278 = vld [vmem:[#allocation5 + $0x40] sm:$0xff]
        %v279 = vld [vmem:[#allocation5 + $0x48] sm:$0xff]
        %v280 = vld [vmem:[#allocation5 + $0x50] sm:$0xff]
        %v281 = vld [vmem:[#allocation5 + $0x58] sm:$0xff]
        %v282 = vld [vmem:[#allocation5 + $0x60] sm:$0xff]
        %v283 = vld [vmem:[#allocation5 + $0x68] sm:$0xff]
        %v284 = vld [vmem:[#allocation5 + $0x70] sm:$0xff]
        %v285 = vld [vmem:[#allocation5 + $0x78] sm:$0xff]
        %v286 = vld [vmem:[%s2] sm:$0x1]
        %v288 = vlaneseq
        %v289 = vshrl.u32 %v288, 7
        %v290 = vsub.s32 0, %v289
        %v291 = vrot.slane %v286, %v290
        %293 = vmatprep.subr.mxu0 0.0
        %294 = vmatpush1.msra.mxu0 %v270
        %295 = vmatprep.subr.mxu0 0.0
        %296 = vmatpush1.msra.mxu0 %v271
        %297 = vmatprep.subr.mxu0 0.0
        %298 = vmatpush1.msra.mxu0 %v272
        %299 = vmatprep.subr.mxu0 0.0
        %300 = vmatpush1.msra.mxu0 %v273
        %301 = vmatprep.subr.mxu0 0.0
        %302 = vmatpush1.msra.mxu0 %v274
        %303 = vmatprep.subr.mxu0 0.0
        %304 = vmatpush1.msra.mxu0 %v275
        %305 = vmatprep.subr.mxu0 0.0
        %306 = vmatpush1.msra.mxu0 %v276
        %307 = vmatprep.subr.mxu0 0.0
        %308 = vmatpush1.msra.mxu0 %v277
        %309 = vmatprep.subr.mxu0 0.0
        %310 = vmatpush1.msra.mxu0 %v278
        %311 = vmatprep.subr.mxu0 0.0
        %312 = vmatpush1.msra.mxu0 %v279
        %313 = vmatprep.subr.mxu0 0.0
        %314 = vmatpush1.msra.mxu0 %v280
        %315 = vmatprep.subr.mxu0 0.0
        %316 = vmatpush1.msra.mxu0 %v281
        %317 = vmatprep.subr.mxu0 0.0
        %318 = vmatpush1.msra.mxu0 %v282
        %319 = vmatprep.subr.mxu0 0.0
        %320 = vmatpush1.msra.mxu0 %v283
        %321 = vmatprep.subr.mxu0 0.0
        %322 = vmatpush1.msra.mxu0 %v284
        %323 = vmatprep.subr.mxu0 0.0
        %324 = vmatpush1.msra.mxu0 %v285
        %325 = vmatprep.subr.mxu0 0.0
        %326 = vmatpush1.msra.mxu0 0.0
        %327 = vmatprep.subr.mxu0 0.0
        %328 = vmatpush1.msra.mxu0 0.0
        %329 = vmatprep.subr.mxu0 0.0
        %330 = vmatpush1.msra.mxu0 0.0
        %331 = vmatprep.subr.mxu0 0.0
        %332 = vmatpush1.msra.mxu0 0.0
        %333 = vmatprep.subr.mxu0 0.0
        %334 = vmatpush1.msra.mxu0 0.0
        %335 = vmatprep.subr.mxu0 0.0
        %336 = vmatpush1.msra.mxu0 0.0
        %337 = vmatprep.subr.mxu0 0.0
        %338 = vmatpush1.msra.mxu0 0.0
        %339 = vmatprep.subr.mxu0 0.0
        %340 = vmatpush1.msra.mxu0 0.0
        %341 = vmatprep.subr.mxu0 0.0
        %342 = vmatpush1.msra.mxu0 0.0
        %343 = vmatprep.subr.mxu0 0.0
        %344 = vmatpush1.msra.mxu0 0.0
        %345 = vmatprep.subr.mxu0 0.0
        %346 = vmatpush1.msra.mxu0 0.0
        %347 = vmatprep.subr.mxu0 0.0
        %348 = vmatpush1.msra.mxu0 0.0
        %349 = vmatprep.subr.mxu0 0.0
        %350 = vmatpush1.msra.mxu0 0.0
        %351 = vmatprep.subr.mxu0 0.0
        %352 = vmatpush1.msra.mxu0 0.0
        %353 = vmatprep.subr.mxu0 0.0
        %354 = vmatpush1.msra.mxu0 0.0
        %355 = vmatprep.subr.mxu0 0.0
        %356 = vmatpush1.msra.mxu0 0.0
        %357 = vmatprep.mubr.f32.mxu0 0.0
        %358 = vmatmul.mubr.f32.gmra.mrb[0].mxu0 %v269
        %v359 = vpop.f32.mrb[0].mxu0
        %v360 = vadd.f32 %v291, %v359
        %v361 = vpop.f32.mrb[0].mxu0
        %362 = vdwg.mxu0
        %v363 = vmax.f32 %v360, 0.0
        %v364 = vlaneseq
        %v365 = vand.u32 %v364, 127
        %v366 = vcvt.f32.s32.to.zero.pseudo %v269
        %v367 = vadd.s32 %v366, 112
        %368 = vset.pattern.permute.xlu0 33
        %369 = vperm.xlu0 %368, %v367
        %v370 = vpop.permute.xlu0 %369
        %vm371 = vcmp.eq.s32.totalorder %v365, %v370
        %v372 = vsel %vm371, 1, 0
        %v373 = vcvt.s32.f32 %v372
        %v374 = vadd.f32 %v363, %v373
        %v375 = vld [vmem:[#allocation7] sm:$0xff]
        %v376 = vld [vmem:[#allocation7 + $0x8] sm:$0xff]
        %v377 = vld [vmem:[#allocation7 + $0x10] sm:$0xff]
        %v378 = vld [vmem:[#allocation7 + $0x18] sm:$0xff]
        %v379 = vld [vmem:[#allocation7 + $0x20] sm:$0xff]
        %v380 = vld [vmem:[#allocation7 + $0x28] sm:$0xff]
        %v381 = vld [vmem:[#allocation7 + $0x30] sm:$0xff]
        %v382 = vld [vmem:[#allocation7 + $0x38] sm:$0xff]
        %v383 = vld [vmem:[#allocation7 + $0x40] sm:$0xff]
        %v384 = vld [vmem:[#allocation7 + $0x48] sm:$0xff]
        %v385 = vld [vmem:[#allocation7 + $0x50] sm:$0xff]
        %v386 = vld [vmem:[#allocation7 + $0x58] sm:$0xff]
        %v387 = vld [vmem:[#allocation7 + $0x60] sm:$0xff]
        %v388 = vld [vmem:[#allocation7 + $0x68] sm:$0xff]
        %v389 = vld [vmem:[#allocation7 + $0x70] sm:$0xff]
        %v390 = vld [vmem:[#allocation7 + $0x78] sm:$0xff]
        %v391 = vld [vmem:[%s4] sm:$0x1]
        %v393 = vlaneseq
        %v394 = vshrl.u32 %v393, 7
        %v395 = vsub.s32 0, %v394
        %v396 = vrot.slane %v391, %v395
        %398 = vmatprep.subr.mxu0 0.0
        %399 = vmatpush1.msra.mxu0 %v375
        %400 = vmatprep.subr.mxu0 0.0
        %401 = vmatpush1.msra.mxu0 %v376
        %402 = vmatprep.subr.mxu0 0.0
        %403 = vmatpush1.msra.mxu0 %v377
        %404 = vmatprep.subr.mxu0 0.0
        %405 = vmatpush1.msra.mxu0 %v378
        %406 = vmatprep.subr.mxu0 0.0
        %407 = vmatpush1.msra.mxu0 %v379
        %408 = vmatprep.subr.mxu0 0.0
        %409 = vmatpush1.msra.mxu0 %v380
        %410 = vmatprep.subr.mxu0 0.0
        %411 = vmatpush1.msra.mxu0 %v381
        %412 = vmatprep.subr.mxu0 0.0
        %413 = vmatpush1.msra.mxu0 %v382
        %414 = vmatprep.subr.mxu0 0.0
        %415 = vmatpush1.msra.mxu0 %v383
        %416 = vmatprep.subr.mxu0 0.0
        %417 = vmatpush1.msra.mxu0 %v384
        %418 = vmatprep.subr.mxu0 0.0
        %419 = vmatpush1.msra.mxu0 %v385
        %420 = vmatprep.subr.mxu0 0.0
        %421 = vmatpush1.msra.mxu0 %v386
        %422 = vmatprep.subr.mxu0 0.0
        %423 = vmatpush1.msra.mxu0 %v387
        %424 = vmatprep.subr.mxu0 0.0
        %425 = vmatpush1.msra.mxu0 %v388
        %426 = vmatprep.subr.mxu0 0.0
        %427 = vmatpush1.msra.mxu0 %v389
        %428 = vmatprep.subr.mxu0 0.0
        %429 = vmatpush1.msra.mxu0 %v390
        %430 = vmatprep.subr.mxu0 0.0
        %431 = vmatpush1.msra.mxu0 0.0
        %432 = vmatprep.subr.mxu0 0.0
        %433 = vmatpush1.msra.mxu0 0.0
        %434 = vmatprep.subr.mxu0 0.0
        %435 = vmatpush1.msra.mxu0 0.0
        %436 = vmatprep.subr.mxu0 0.0
        %437 = vmatpush1.msra.mxu0 0.0
        %438 = vmatprep.subr.mxu0 0.0
        %439 = vmatpush1.msra.mxu0 0.0
        %440 = vmatprep.subr.mxu0 0.0
        %441 = vmatpush1.msra.mxu0 0.0
        %442 = vmatprep.subr.mxu0 0.0
        %443 = vmatpush1.msra.mxu0 0.0
        %444 = vmatprep.subr.mxu0 0.0
        %445 = vmatpush1.msra.mxu0 0.0
        %446 = vmatprep.subr.mxu0 0.0
        %447 = vmatpush1.msra.mxu0 0.0
        %448 = vmatprep.subr.mxu0 0.0
        %449 = vmatpush1.msra.mxu0 0.0
        %450 = vmatprep.subr.mxu0 0.0
        %451 = vmatpush1.msra.mxu0 0.0
        %452 = vmatprep.subr.mxu0 0.0
        %453 = vmatpush1.msra.mxu0 0.0
        %454 = vmatprep.subr.mxu0 0.0
        %455 = vmatpush1.msra.mxu0 0.0
        %456 = vmatprep.subr.mxu0 0.0
        %457 = vmatpush1.msra.mxu0 0.0
        %458 = vmatprep.subr.mxu0 0.0
        %459 = vmatpush1.msra.mxu0 0.0
        %460 = vmatprep.subr.mxu0 0.0
        %461 = vmatpush1.msra.mxu0 0.0
        %462 = vmatprep.mubr.f32.mxu0 0.0
        %463 = vmatmul.mubr.f32.gmra.mrb[0].mxu0 %v374
        %v464 = vpop.f32.mrb[0].mxu0
        %v465 = vadd.f32 %v396, %v464
        %v466 = vpop.f32.mrb[0].mxu0
        %467 = vdwg.mxu0
        %vm468 = vcmp.ge.s32.totalorder %v365, 8
        %vm469 = vcmp.lt.s32.totalorder %v365, 16
        %vm470 = vmand %vm468, %vm469
        %v471 = vmax.f32 %v465, 0.0
        %v472 = vsel %vm470, %v465, %v471
        %473 = vst [vmem:[%s268] sm:$0xff] %v472
        %s474 = sand.u32 %s141, 1
        %s475 = scalar_lea.sflag [#allocation4], %s474
        %s476 = sand.u32 %s141, 1
        %s477 = smul.addr %s476, 8
        %s478 = scalar_lea.vmem [#allocation8], %s477
        // Predicated region
        $region53: #{tpu_custom_call.1} parent=39 // pred_check
          %p479 = pneg %p151
        $region54: #{tpu_custom_call.1} parent=39 // pred_check_branch
          %481 = sbr.rel (%p479) target = $region56
        $region55: #{tpu_custom_call.1} parent=39 // pred_region
          %s483 = ssub.s32 128, 128
          %484 = vsyncadd %s475, %s483
          %s485 = smul.addr %s23, 128
          %s486 = scalar_lea.hbm %s5, %s485
          %s488 = sshll.u32 %s478, 4
          %s489 = int_to_ptr.vmem [resolvable:$true] %s488
          %491 = dma.vmem_to_hbm [thread:$0]  %s489, 128, %s486, %s475
        $region56: #{tpu_custom_call.1} parent=39 // pred_fallthru
          _
      $region40: #{tpu_custom_call.1} parent=5 // pred_fallthru
        _
      %p492 = scmp.le.s32.totalorder 2, %s18
      // Predicated region
      $region57: #{tpu_custom_call.1} parent=5 // pred_check
        %p493 = pneg %p492
      $region58: #{tpu_custom_call.1} parent=5 // pred_check_branch
        %495 = sbr.rel (%p493) target = $region60
      $region59: #{tpu_custom_call.1} parent=5 // pred_region
        %s496 = ssub.s32 %s18, 2
        // Predicated region
        $region61: #{tpu_custom_call.1} parent=59 // pred_check
          %p497 = pneg %p157
        $region62: #{tpu_custom_call.1} parent=59 // pred_check_branch
          %499 = sbr.rel (%p497) target = $region64
        $region63: #{tpu_custom_call.1} parent=59 // pred_region
          %s500 = sand.u32 %s142, 1
          %s501 = scalar_lea.sflag [#allocation4], %s500
          %s502 = sand.u32 %s142, 1
          %s503 = smul.addr %s502, 8
          %s504 = scalar_lea.vmem [#allocation8], %s503
          %505 = dma.done %s501, 128
        $region64: #{tpu_custom_call.1} parent=59 // pred_fallthru
          _
      $region60: #{tpu_custom_call.1} parent=5 // pred_fallthru
        _
    $region6: #{tpu_custom_call.1} parent=1 // loop_footer
      %s22 = sadd.s32 1, %s18
    $region7: #{tpu_custom_call.1} parent=1 // loop_footer_branch
      %17 = sbr.rel target = $region3
    $region8: #{tpu_custom_call.1} parent=1 // loop_exit
      _
    %506 = vsyncpa [#allocation3], 1
    %s507 = scalar_lea.sflag [#allocation3], 1
    %508 = vsyncpa %s507, 1
    %509 = vsyncpa [#allocation6], 1
    %510 = vsyncpa [#allocation4], 1
    %s511 = scalar_lea.sflag [#allocation4], 1
    %512 = vsyncpa %s511, 1

</llo_original>
